<compile_context>
chip_gen: v5e
topology: v5e:2x2
jax: 0.10.0
libtpu: 0.0.40
codegen_flags: <defaults>
</compile_context>

<pallas_src>
import functools

import jax
import jax.numpy as jnp
from jax.experimental import pallas as pl
from jax.experimental.pallas import tpu as pltpu

NEG_INF = -9e15  # same fill value the reference GATLayer uses


def _gat_actor_kernel(x_ref, adj_ref, w1_ref, b1_ref, a1_ref,
                      w2_ref, b2_ref, a2_ref, o_ref, *,
                      num_heads, leaky_alpha):
  """Fused 2-layer GAT forward for one batch element.

  x_ref   : (1, N, F)        node features
  adj_ref : (1, N, N)        0/1 adjacency
  w*_ref  : (Cin, Cout)      projection weight (Cout = H * Cp)
  b*_ref  : (1, Cout)        projection bias
  a*_ref  : (Cout, 2H)       block-diagonal attention matrix (built in wrapper)
  o_ref   : (1, N, nclass)   output class probabilities
  """
  x = x_ref[0]          # (N, F)
  adj = adj_ref[0]      # (N, N)

  # Additive attention mask: 0 on edges, NEG_INF elsewhere.  Computed ONCE and
  # reused by both layers / all heads.  exp() of masked logits underflows to
  # exactly 0, identical to the reference's where(adj==1, e, -9e15).
  adj_bias = jnp.where(adj == 1.0, 0.0, NEG_INF)[None, :, :]   # (1, N, N)

  def gat_layer(h_in, w, b, a_mat):
    cout = w.shape[1]
    cp = cout // num_heads

    # Projection + all-head attention coefficients: two MXU matmuls.
    h = jnp.dot(h_in, w, preferred_element_type=jnp.float32) + b     # (N, Cout)
    alpha_t = jnp.dot(h, a_mat,
                      preferred_element_type=jnp.float32).T          # (2H, N)
    a_l = alpha_t[:num_heads]        # (H, N): a_l[h, i]
    a_r = alpha_t[num_heads:]        # (H, N): a_r[h, j]

    # Head-stacked logits: one LeakyReLU / mask / softmax pass for all heads.
    raw = a_l[:, :, None] + a_r[:, None, :]                          # (H, N, N)
    e = jnp.where(raw > 0, raw, leaky_alpha * raw)                   # LeakyReLU
    masked = e + adj_bias                                            # (H, N, N)
    m = jnp.max(masked, axis=-1, keepdims=True)
    p = jnp.exp(masked - m)
    denom = jnp.sum(p, axis=-1, keepdims=True)
    probs = p * pl.reciprocal(denom, approx=True)                    # (H, N, N)

    # Attention-weighted aggregation (tiny MXU dots), heads concatenated into
    # a single lane-dense (N, Cout) value (no partial stores).
    outs = [jnp.dot(probs[hd], h[:, hd * cp:(hd + 1) * cp],
                    preferred_element_type=jnp.float32)
            for hd in range(num_heads)]
    return jnp.concatenate(outs, axis=1)                             # (N, Cout)

  # ---- Layer 1 + ELU (h1 never leaves VMEM/vregs) ----
  h1 = gat_layer(x, w1_ref[...], b1_ref[...], a1_ref[...])
  h1 = jnp.where(h1 > 0, h1, jnp.exp(jnp.minimum(h1, 0.0)) - 1.0)    # safe ELU

  # ---- Layer 2 + class softmax, single dense store ----
  h2 = gat_layer(h1, w2_ref[...], b2_ref[...], a2_ref[...])          # (N, nclass)
  m2 = jnp.max(h2, axis=-1, keepdims=True)
  p2 = jnp.exp(h2 - m2)
  o_ref[0] = p2 / jnp.sum(p2, axis=-1, keepdims=True)


def _block_diag_attn(a, num_heads):
  """(H, 2*Cp) attention vectors -> (H*Cp, 2H) block-diagonal matrix so that
  h @ A yields [alpha_l | alpha_r] of shape (N, 2H) in ONE MXU matmul."""
  H, two_cp = a.shape
  assert H == num_heads
  cp = two_cp // 2
  eye = jnp.eye(H, dtype=a.dtype)
  a_l = (a[:, :cp, None] * eye[:, None, :]).reshape(H * cp, H)
  a_r = (a[:, cp:, None] * eye[:, None, :]).reshape(H * cp, H)
  return jnp.concatenate([a_l, a_r], axis=1)                         # (Cout, 2H)


def gat_actor_forward(obs, adj, params, *, num_heads, leaky_alpha=0.2):
  """Pallas implementation of GAT_actor.forward (eval mode)."""
  B, N, F = obs.shape
  nhid = params["w1"].shape[1]
  nclass = params["w2"].shape[1]

  a1 = _block_diag_attn(params["a1"], num_heads)     # (nhid,   2H)
  a2 = _block_diag_attn(params["a2"], num_heads)     # (nclass, 2H)
  b1 = params["b1"].reshape(1, nhid)
  b2 = params["b2"].reshape(1, nclass)

  kernel = functools.partial(_gat_actor_kernel, num_heads=num_heads,
                             leaky_alpha=leaky_alpha)
  out = pl.pallas_call(
      kernel,
      out_shape=jax.ShapeDtypeStruct((B, N, nclass), jnp.float32),
      grid=(B,),
      in_specs=[
          pl.BlockSpec((1, N, F), lambda i: (i, 0, 0)),              # obs
          pl.BlockSpec((1, N, N), lambda i: (i, 0, 0)),              # adj
          pl.BlockSpec((F, nhid), lambda i: (0, 0)),                 # w1
          pl.BlockSpec((1, nhid), lambda i: (0, 0)),                 # b1
          pl.BlockSpec((nhid, 2 * num_heads), lambda i: (0, 0)),     # A1
          pl.BlockSpec((nhid, nclass), lambda i: (0, 0)),            # w2
          pl.BlockSpec((1, nclass), lambda i: (0, 0)),               # b2
          pl.BlockSpec((nclass, 2 * num_heads), lambda i: (0, 0)),   # A2
      ],
      out_specs=pl.BlockSpec((1, N, nclass), lambda i: (i, 0, 0)),
      compiler_params=pltpu.CompilerParams(
          dimension_semantics=("parallel",)),                        # v7x: 2 TCs
  )(obs, adj, params["w1"], b1, a1, params["w2"], b2, a2)

  if B == 1:
    out = jnp.squeeze(out)   # matches torch.squeeze (all size-1 dims)
  return out


# ----------------------------- pure-JAX reference -----------------------------
def _gat_layer_ref(x, adj, w, b, a, num_heads, leaky_alpha=0.2):
  B, N, _ = x.shape
  Cout = w.shape[1]
  Cp = Cout // num_heads
  h = jnp.einsum("bnc,cd->bnd", x, w) + b
  hh = h.reshape(B, N, num_heads, Cp)
  a_l, a_r = a[:, :Cp], a[:, Cp:]
  al = jnp.einsum("bnhc,hc->bnh", hh, a_l)
  ar = jnp.einsum("bnhc,hc->bnh", hh, a_r)
  raw = al[:, :, None, :] + ar[:, None, :, :]            # (B, Ni, Nj, H)
  e = jnp.where(raw > 0, raw, leaky_alpha * raw)
  masked = jnp.where(adj[..., None] == 1.0, e, NEG_INF)
  probs = jax.nn.softmax(masked, axis=2)
  out = jnp.einsum("bijh,bjhc->bihc", probs, hh)
  return out.reshape(B, N, Cout)


def gat_actor_ref(obs, adj, params, *, num_heads):
  h1 = jax.nn.elu(_gat_layer_ref(obs, adj, params["w1"], params["b1"],
                                 params["a1"], num_heads))
  o2 = _gat_layer_ref(h1, adj, params["w2"], params["b2"],
                      params["a2"], num_heads)
  out = jax.nn.softmax(o2, axis=2)
  if out.shape[0] == 1:
    out = jnp.squeeze(out)
  return out


# ------------------------------------ main ------------------------------------
if __name__ == "__main__":
  B, N = 2, 8
  nfeat, nhid, num_heads, nclass = 16, 32, 4, 8   # nhid/nclass divisible by heads

  key = jax.random.PRNGKey(0)
  k = jax.random.split(key, 8)

  obs = jax.random.normal(k[0], (B, N, nfeat), dtype=jnp.float32)
  adj = (jax.random.uniform(k[1], (B, N, N)) > 0.5).astype(jnp.float32)
  adj = jnp.maximum(adj, jnp.eye(N, dtype=jnp.float32)[None])  # self loops

  cp1 = nhid // num_heads
  cp2 = nclass // num_heads
  params = {
      "w1": 0.2 * jax.random.normal(k[2], (nfeat, nhid), dtype=jnp.float32),
      "b1": 0.1 * jax.random.normal(k[3], (nhid,), dtype=jnp.float32),
      "a1": 0.2 * jax.random.normal(k[4], (num_heads, 2 * cp1), dtype=jnp.float32),
      "w2": 0.2 * jax.random.normal(k[5], (nhid, nclass), dtype=jnp.float32),
      "b2": 0.1 * jax.random.normal(k[6], (nclass,), dtype=jnp.float32),
      "a2": 0.2 * jax.random.normal(k[7], (num_heads, 2 * cp2), dtype=jnp.float32),
  }

  out = gat_actor_forward(obs, adj, params, num_heads=num_heads)
  out = jax.block_until_ready(out)

  ref = gat_actor_ref(obs, adj, params, num_heads=num_heads)
  assert out.shape == (B, N, nclass), out.shape
  # 1e-3 tolerance: pl.reciprocal(approx=True) in the attention softmaxes.
  assert jnp.allclose(out, ref, atol=1e-3, rtol=1e-3), "Pallas/JAX mismatch"

  print("KERNEL_OK")
</pallas_src>

<mosaic_0001>
module attributes {stable_mosaic.version = 11 : i64} {
  func.func @_gat_actor_kernel(%arg0: i32, %arg1: memref<1x8x16xf32, #tpu.memory_space<vmem>>, %arg2: memref<1x8x8xf32, #tpu.memory_space<vmem>>, %arg3: memref<16x32xf32, #tpu.memory_space<vmem>>, %arg4: memref<1x32xf32, #tpu.memory_space<vmem>>, %arg5: memref<32x8xf32, #tpu.memory_space<vmem>>, %arg6: memref<32x8xf32, #tpu.memory_space<vmem>>, %arg7: memref<1x8xf32, #tpu.memory_space<vmem>>, %arg8: memref<8x8xf32, #tpu.memory_space<vmem>>, %arg9: memref<1x8x8xf32, #tpu.memory_space<vmem>>) attributes {dimension_semantics = [#tpu.dimension_semantics<parallel>], iteration_bounds = array<i64: 2>, scalar_prefetch = 0 : i64, scratch_operands = 0 : i64, tpu.core_type = #tpu.core_type<tc>, window_params = [{transform_indices = @transform_0, window_bounds = array<i64: 1, 8, 16>}, {transform_indices = @transform_1, window_bounds = array<i64: 1, 8, 8>}, {pipeline_mode = #tpu.pipeline_mode<synchronous>, transform_indices = @transform_2, window_bounds = array<i64: 16, 32>}, {pipeline_mode = #tpu.pipeline_mode<synchronous>, transform_indices = @transform_3, window_bounds = array<i64: 1, 32>}, {pipeline_mode = #tpu.pipeline_mode<synchronous>, transform_indices = @transform_4, window_bounds = array<i64: 32, 8>}, {pipeline_mode = #tpu.pipeline_mode<synchronous>, transform_indices = @transform_5, window_bounds = array<i64: 32, 8>}, {pipeline_mode = #tpu.pipeline_mode<synchronous>, transform_indices = @transform_6, window_bounds = array<i64: 1, 8>}, {pipeline_mode = #tpu.pipeline_mode<synchronous>, transform_indices = @transform_7, window_bounds = array<i64: 8, 8>}, {transform_indices = @transform_8, window_bounds = array<i64: 1, 8, 8>}]} {
    %c0 = arith.constant 0 : index
    %c0_0 = arith.constant 0 : index
    %c0_1 = arith.constant 0 : index
    %0 = vector.load %arg1[%c0, %c0_0, %c0_1] : memref<1x8x16xf32, #tpu.memory_space<vmem>>, vector<1x8x16xf32>
    %1 = vector.shape_cast %0 : vector<1x8x16xf32> to vector<8x16xf32>
    %c0_2 = arith.constant 0 : index
    %c0_3 = arith.constant 0 : index
    %c0_4 = arith.constant 0 : index
    %2 = vector.load %arg2[%c0_2, %c0_3, %c0_4] : memref<1x8x8xf32, #tpu.memory_space<vmem>>, vector<1x8x8xf32>
    %3 = vector.shape_cast %2 : vector<1x8x8xf32> to vector<8x8xf32>
    %cst = arith.constant 1.000000e+00 : f32
    %4 = vector.broadcast %cst : f32 to vector<8x8xf32>
    %5 = arith.cmpf oeq, %3, %4 : vector<8x8xf32>
    %cst_5 = arith.constant 0.000000e+00 : f32
    %cst_6 = arith.constant -9.000000e+15 : f32
    %6 = vector.broadcast %cst_5 : f32 to vector<8x8xf32>
    %7 = vector.broadcast %cst_6 : f32 to vector<8x8xf32>
    %8 = arith.select %5, %6, %7 : vector<8x8xi1>, vector<8x8xf32>
    %9 = vector.shape_cast %8 : vector<8x8xf32> to vector<1x8x8xf32>
    %c0_7 = arith.constant 0 : index
    %c0_8 = arith.constant 0 : index
    %10 = vector.load %arg3[%c0_7, %c0_8] : memref<16x32xf32, #tpu.memory_space<vmem>>, vector<16x32xf32>
    %c0_9 = arith.constant 0 : index
    %c0_10 = arith.constant 0 : index
    %11 = vector.load %arg4[%c0_9, %c0_10] : memref<1x32xf32, #tpu.memory_space<vmem>>, vector<1x32xf32>
    %c0_11 = arith.constant 0 : index
    %c0_12 = arith.constant 0 : index
    %12 = vector.load %arg5[%c0_11, %c0_12] : memref<32x8xf32, #tpu.memory_space<vmem>>, vector<32x8xf32>
    %cst_13 = arith.constant dense<0.000000e+00> : vector<8x32xf32>
    %13 = tpu.matmul %1, %10, %cst_13 {dimension_numbers = #tpu.dot_dimension_numbers<[1], [0], [0], [1], [0, 0, 1, 1], [], []>} : vector<8x16xf32>, vector<16x32xf32>, vector<8x32xf32> -> vector<8x32xf32>
    %14 = vector.broadcast %11 : vector<1x32xf32> to vector<8x32xf32>
    %15 = arith.addf %13, %14 : vector<8x32xf32>
    %cst_14 = arith.constant dense<0.000000e+00> : vector<8x8xf32>
    %16 = tpu.matmul %15, %12, %cst_14 {dimension_numbers = #tpu.dot_dimension_numbers<[1], [0], [0], [1], [0, 0, 1, 1], [], []>} : vector<8x32xf32>, vector<32x8xf32>, vector<8x8xf32> -> vector<8x8xf32>
    %17 = tpu.transpose %16, [1, 0] : vector<8x8xf32> -> vector<8x8xf32>
    %18 = vector.extract_strided_slice %17 {offsets = [0, 0], sizes = [4, 8], strides = [1, 1]} : vector<8x8xf32> to vector<4x8xf32>
    %19 = vector.extract_strided_slice %17 {offsets = [4, 0], sizes = [4, 8], strides = [1, 1]} : vector<8x8xf32> to vector<4x8xf32>
    %20 = vector.shape_cast %18 : vector<4x8xf32> to vector<4x8x1xf32>
    %21 = vector.shape_cast %19 : vector<4x8xf32> to vector<4x1x8xf32>
    %22 = vector.broadcast %20 : vector<4x8x1xf32> to vector<4x8x8xf32>
    %23 = vector.broadcast %21 : vector<4x1x8xf32> to vector<4x8x8xf32>
    %24 = arith.addf %22, %23 : vector<4x8x8xf32>
    %cst_15 = arith.constant 0.000000e+00 : f32
    %25 = vector.broadcast %cst_15 : f32 to vector<4x8x8xf32>
    %26 = arith.cmpf ogt, %24, %25 : vector<4x8x8xf32>
    %cst_16 = arith.constant 2.000000e-01 : f32
    %27 = vector.broadcast %cst_16 : f32 to vector<4x8x8xf32>
    %28 = arith.mulf %27, %24 : vector<4x8x8xf32>
    %29 = arith.select %26, %24, %28 : vector<4x8x8xi1>, vector<4x8x8xf32>
    %30 = vector.broadcast %9 : vector<1x8x8xf32> to vector<4x8x8xf32>
    %31 = arith.addf %29, %30 : vector<4x8x8xf32>
    %cst_17 = arith.constant dense<0xFF800000> : vector<4x8xf32>
    %32 = vector.multi_reduction <maximumf>, %31, %cst_17 [2] : vector<4x8x8xf32> to vector<4x8xf32>
    %33 = vector.shape_cast %32 : vector<4x8xf32> to vector<4x8x1xf32>
    %34 = vector.broadcast %33 : vector<4x8x1xf32> to vector<4x8x8xf32>
    %35 = arith.subf %31, %34 : vector<4x8x8xf32>
    %36 = math.exp %35 : vector<4x8x8xf32>
    %cst_18 = arith.constant dense<0.000000e+00> : vector<4x8xf32>
    %37 = vector.multi_reduction <add>, %36, %cst_18 [2] : vector<4x8x8xf32> to vector<4x8xf32>
    %38 = vector.shape_cast %37 : vector<4x8xf32> to vector<4x8x1xf32>
    %39 = tpu.reciprocal %38 {approx = true} : vector<4x8x1xf32> -> vector<4x8x1xf32>
    %40 = vector.broadcast %39 : vector<4x8x1xf32> to vector<4x8x8xf32>
    %41 = arith.mulf %36, %40 : vector<4x8x8xf32>
    %42 = vector.extract_strided_slice %41 {offsets = [0, 0, 0], sizes = [1, 8, 8], strides = [1, 1, 1]} : vector<4x8x8xf32> to vector<1x8x8xf32>
    %43 = vector.shape_cast %42 : vector<1x8x8xf32> to vector<8x8xf32>
    %44 = vector.extract_strided_slice %15 {offsets = [0, 0], sizes = [8, 8], strides = [1, 1]} : vector<8x32xf32> to vector<8x8xf32>
    %cst_19 = arith.constant dense<0.000000e+00> : vector<8x8xf32>
    %45 = tpu.matmul %43, %44, %cst_19 {dimension_numbers = #tpu.dot_dimension_numbers<[1], [0], [0], [1], [0, 0, 1, 1], [], []>} : vector<8x8xf32>, vector<8x8xf32>, vector<8x8xf32> -> vector<8x8xf32>
    %46 = vector.extract_strided_slice %41 {offsets = [1, 0, 0], sizes = [1, 8, 8], strides = [1, 1, 1]} : vector<4x8x8xf32> to vector<1x8x8xf32>
    %47 = vector.shape_cast %46 : vector<1x8x8xf32> to vector<8x8xf32>
    %48 = vector.extract_strided_slice %15 {offsets = [0, 8], sizes = [8, 8], strides = [1, 1]} : vector<8x32xf32> to vector<8x8xf32>
    %cst_20 = arith.constant dense<0.000000e+00> : vector<8x8xf32>
    %49 = tpu.matmul %47, %48, %cst_20 {dimension_numbers = #tpu.dot_dimension_numbers<[1], [0], [0], [1], [0, 0, 1, 1], [], []>} : vector<8x8xf32>, vector<8x8xf32>, vector<8x8xf32> -> vector<8x8xf32>
    %50 = vector.extract_strided_slice %41 {offsets = [2, 0, 0], sizes = [1, 8, 8], strides = [1, 1, 1]} : vector<4x8x8xf32> to vector<1x8x8xf32>
    %51 = vector.shape_cast %50 : vector<1x8x8xf32> to vector<8x8xf32>
    %52 = vector.extract_strided_slice %15 {offsets = [0, 16], sizes = [8, 8], strides = [1, 1]} : vector<8x32xf32> to vector<8x8xf32>
    %cst_21 = arith.constant dense<0.000000e+00> : vector<8x8xf32>
    %53 = tpu.matmul %51, %52, %cst_21 {dimension_numbers = #tpu.dot_dimension_numbers<[1], [0], [0], [1], [0, 0, 1, 1], [], []>} : vector<8x8xf32>, vector<8x8xf32>, vector<8x8xf32> -> vector<8x8xf32>
    %54 = vector.extract_strided_slice %41 {offsets = [3, 0, 0], sizes = [1, 8, 8], strides = [1, 1, 1]} : vector<4x8x8xf32> to vector<1x8x8xf32>
    %55 = vector.shape_cast %54 : vector<1x8x8xf32> to vector<8x8xf32>
    %56 = vector.extract_strided_slice %15 {offsets = [0, 24], sizes = [8, 8], strides = [1, 1]} : vector<8x32xf32> to vector<8x8xf32>
    %cst_22 = arith.constant dense<0.000000e+00> : vector<8x8xf32>
    %57 = tpu.matmul %55, %56, %cst_22 {dimension_numbers = #tpu.dot_dimension_numbers<[1], [0], [0], [1], [0, 0, 1, 1], [], []>} : vector<8x8xf32>, vector<8x8xf32>, vector<8x8xf32> -> vector<8x8xf32>
    %58 = tpu.concatenate %45, %49, %53, %57 in 1 : vector<8x8xf32>, vector<8x8xf32>, vector<8x8xf32>, vector<8x8xf32> -> vector<8x32xf32>
    %cst_23 = arith.constant 0.000000e+00 : f32
    %59 = vector.broadcast %cst_23 : f32 to vector<8x32xf32>
    %60 = arith.cmpf ogt, %58, %59 : vector<8x32xf32>
    %cst_24 = arith.constant 0.000000e+00 : f32
    %61 = vector.broadcast %cst_24 : f32 to vector<8x32xf32>
    %62 = arith.minimumf %58, %61 : vector<8x32xf32>
    %63 = math.exp %62 : vector<8x32xf32>
    %cst_25 = arith.constant 1.000000e+00 : f32
    %64 = vector.broadcast %cst_25 : f32 to vector<8x32xf32>
    %65 = arith.subf %63, %64 : vector<8x32xf32>
    %66 = arith.select %60, %58, %65 : vector<8x32xi1>, vector<8x32xf32>
    %c0_26 = arith.constant 0 : index
    %c0_27 = arith.constant 0 : index
    %67 = vector.load %arg6[%c0_26, %c0_27] : memref<32x8xf32, #tpu.memory_space<vmem>>, vector<32x8xf32>
    %c0_28 = arith.constant 0 : index
    %c0_29 = arith.constant 0 : index
    %68 = vector.load %arg7[%c0_28, %c0_29] : memref<1x8xf32, #tpu.memory_space<vmem>>, vector<1x8xf32>
    %c0_30 = arith.constant 0 : index
    %c0_31 = arith.constant 0 : index
    %69 = vector.load %arg8[%c0_30, %c0_31] : memref<8x8xf32, #tpu.memory_space<vmem>>, vector<8x8xf32>
    %cst_32 = arith.constant dense<0.000000e+00> : vector<8x8xf32>
    %70 = tpu.matmul %66, %67, %cst_32 {dimension_numbers = #tpu.dot_dimension_numbers<[1], [0], [0], [1], [0, 0, 1, 1], [], []>} : vector<8x32xf32>, vector<32x8xf32>, vector<8x8xf32> -> vector<8x8xf32>
    %71 = vector.broadcast %68 : vector<1x8xf32> to vector<8x8xf32>
    %72 = arith.addf %70, %71 : vector<8x8xf32>
    %cst_33 = arith.constant dense<0.000000e+00> : vector<8x8xf32>
    %73 = tpu.matmul %72, %69, %cst_33 {dimension_numbers = #tpu.dot_dimension_numbers<[1], [0], [0], [1], [0, 0, 1, 1], [], []>} : vector<8x8xf32>, vector<8x8xf32>, vector<8x8xf32> -> vector<8x8xf32>
    %74 = tpu.transpose %73, [1, 0] : vector<8x8xf32> -> vector<8x8xf32>
    %75 = vector.extract_strided_slice %74 {offsets = [0, 0], sizes = [4, 8], strides = [1, 1]} : vector<8x8xf32> to vector<4x8xf32>
    %76 = vector.extract_strided_slice %74 {offsets = [4, 0], sizes = [4, 8], strides = [1, 1]} : vector<8x8xf32> to vector<4x8xf32>
    %77 = vector.shape_cast %75 : vector<4x8xf32> to vector<4x8x1xf32>
    %78 = vector.shape_cast %76 : vector<4x8xf32> to vector<4x1x8xf32>
    %79 = vector.broadcast %77 : vector<4x8x1xf32> to vector<4x8x8xf32>
    %80 = vector.broadcast %78 : vector<4x1x8xf32> to vector<4x8x8xf32>
    %81 = arith.addf %79, %80 : vector<4x8x8xf32>
    %cst_34 = arith.constant 0.000000e+00 : f32
    %82 = vector.broadcast %cst_34 : f32 to vector<4x8x8xf32>
    %83 = arith.cmpf ogt, %81, %82 : vector<4x8x8xf32>
    %cst_35 = arith.constant 2.000000e-01 : f32
    %84 = vector.broadcast %cst_35 : f32 to vector<4x8x8xf32>
    %85 = arith.mulf %84, %81 : vector<4x8x8xf32>
    %86 = arith.select %83, %81, %85 : vector<4x8x8xi1>, vector<4x8x8xf32>
    %87 = vector.broadcast %9 : vector<1x8x8xf32> to vector<4x8x8xf32>
    %88 = arith.addf %86, %87 : vector<4x8x8xf32>
    %cst_36 = arith.constant dense<0xFF800000> : vector<4x8xf32>
    %89 = vector.multi_reduction <maximumf>, %88, %cst_36 [2] : vector<4x8x8xf32> to vector<4x8xf32>
    %90 = vector.shape_cast %89 : vector<4x8xf32> to vector<4x8x1xf32>
    %91 = vector.broadcast %90 : vector<4x8x1xf32> to vector<4x8x8xf32>
    %92 = arith.subf %88, %91 : vector<4x8x8xf32>
    %93 = math.exp %92 : vector<4x8x8xf32>
    %cst_37 = arith.constant dense<0.000000e+00> : vector<4x8xf32>
    %94 = vector.multi_reduction <add>, %93, %cst_37 [2] : vector<4x8x8xf32> to vector<4x8xf32>
    %95 = vector.shape_cast %94 : vector<4x8xf32> to vector<4x8x1xf32>
    %96 = tpu.reciprocal %95 {approx = true} : vector<4x8x1xf32> -> vector<4x8x1xf32>
    %97 = vector.broadcast %96 : vector<4x8x1xf32> to vector<4x8x8xf32>
    %98 = arith.mulf %93, %97 : vector<4x8x8xf32>
    %99 = vector.extract_strided_slice %98 {offsets = [0, 0, 0], sizes = [1, 8, 8], strides = [1, 1, 1]} : vector<4x8x8xf32> to vector<1x8x8xf32>
    %100 = vector.shape_cast %99 : vector<1x8x8xf32> to vector<8x8xf32>
    %101 = vector.extract_strided_slice %72 {offsets = [0, 0], sizes = [8, 2], strides = [1, 1]} : vector<8x8xf32> to vector<8x2xf32>
    %cst_38 = arith.constant dense<0.000000e+00> : vector<8x2xf32>
    %102 = tpu.matmul %100, %101, %cst_38 {dimension_numbers = #tpu.dot_dimension_numbers<[1], [0], [0], [1], [0, 0, 1, 1], [], []>} : vector<8x8xf32>, vector<8x2xf32>, vector<8x2xf32> -> vector<8x2xf32>
    %103 = vector.extract_strided_slice %98 {offsets = [1, 0, 0], sizes = [1, 8, 8], strides = [1, 1, 1]} : vector<4x8x8xf32> to vector<1x8x8xf32>
    %104 = vector.shape_cast %103 : vector<1x8x8xf32> to vector<8x8xf32>
    %105 = vector.extract_strided_slice %72 {offsets = [0, 2], sizes = [8, 2], strides = [1, 1]} : vector<8x8xf32> to vector<8x2xf32>
    %cst_39 = arith.constant dense<0.000000e+00> : vector<8x2xf32>
    %106 = tpu.matmul %104, %105, %cst_39 {dimension_numbers = #tpu.dot_dimension_numbers<[1], [0], [0], [1], [0, 0, 1, 1], [], []>} : vector<8x8xf32>, vector<8x2xf32>, vector<8x2xf32> -> vector<8x2xf32>
    %107 = vector.extract_strided_slice %98 {offsets = [2, 0, 0], sizes = [1, 8, 8], strides = [1, 1, 1]} : vector<4x8x8xf32> to vector<1x8x8xf32>
    %108 = vector.shape_cast %107 : vector<1x8x8xf32> to vector<8x8xf32>
    %109 = vector.extract_strided_slice %72 {offsets = [0, 4], sizes = [8, 2], strides = [1, 1]} : vector<8x8xf32> to vector<8x2xf32>
    %cst_40 = arith.constant dense<0.000000e+00> : vector<8x2xf32>
    %110 = tpu.matmul %108, %109, %cst_40 {dimension_numbers = #tpu.dot_dimension_numbers<[1], [0], [0], [1], [0, 0, 1, 1], [], []>} : vector<8x8xf32>, vector<8x2xf32>, vector<8x2xf32> -> vector<8x2xf32>
    %111 = vector.extract_strided_slice %98 {offsets = [3, 0, 0], sizes = [1, 8, 8], strides = [1, 1, 1]} : vector<4x8x8xf32> to vector<1x8x8xf32>
    %112 = vector.shape_cast %111 : vector<1x8x8xf32> to vector<8x8xf32>
    %113 = vector.extract_strided_slice %72 {offsets = [0, 6], sizes = [8, 2], strides = [1, 1]} : vector<8x8xf32> to vector<8x2xf32>
    %cst_41 = arith.constant dense<0.000000e+00> : vector<8x2xf32>
    %114 = tpu.matmul %112, %113, %cst_41 {dimension_numbers = #tpu.dot_dimension_numbers<[1], [0], [0], [1], [0, 0, 1, 1], [], []>} : vector<8x8xf32>, vector<8x2xf32>, vector<8x2xf32> -> vector<8x2xf32>
    %115 = tpu.concatenate %102, %106, %110, %114 in 1 : vector<8x2xf32>, vector<8x2xf32>, vector<8x2xf32>, vector<8x2xf32> -> vector<8x8xf32>
    %cst_42 = arith.constant dense<0xFF800000> : vector<8xf32>
    %116 = vector.multi_reduction <maximumf>, %115, %cst_42 [1] : vector<8x8xf32> to vector<8xf32>
    %117 = vector.shape_cast %116 : vector<8xf32> to vector<8x1xf32>
    %118 = vector.broadcast %117 : vector<8x1xf32> to vector<8x8xf32>
    %119 = arith.subf %115, %118 : vector<8x8xf32>
    %120 = math.exp %119 : vector<8x8xf32>
    %cst_43 = arith.constant dense<0.000000e+00> : vector<8xf32>
    %121 = vector.multi_reduction <add>, %120, %cst_43 [1] : vector<8x8xf32> to vector<8xf32>
    %122 = vector.shape_cast %121 : vector<8xf32> to vector<8x1xf32>
    %123 = vector.broadcast %122 : vector<8x1xf32> to vector<8x8xf32>
    %124 = arith.divf %120, %123 : vector<8x8xf32>
    %c0_44 = arith.constant 0 : index
    %c0_45 = arith.constant 0 : index
    %c0_46 = arith.constant 0 : index
    %125 = vector.load %arg9[%c0_44, %c0_45, %c0_46] : memref<1x8x8xf32, #tpu.memory_space<vmem>>, vector<1x8x8xf32>
    %126 = vector.shape_cast %125 : vector<1x8x8xf32> to vector<8x8xf32>
    %127 = vector.shape_cast %124 : vector<8x8xf32> to vector<1x8x8xf32>
    tpu.vector_store %arg9[%c0_44, %c0_45, %c0_46], %127 {strides = array<i32>} : memref<1x8x8xf32, #tpu.memory_space<vmem>>, vector<1x8x8xf32>,
    return
  }
  func.func @transform_0(%arg0: i32) -> (i32, i32, i32) {
    %c0_i32 = arith.constant 0 : i32
    %c0_i32_0 = arith.constant 0 : i32
    %c0_i32_1 = arith.constant 0 : i32
    return %arg0, %c0_i32, %c0_i32_0 : i32, i32, i32
  }
  func.func @transform_1(%arg0: i32) -> (i32, i32, i32) {
    %c0_i32 = arith.constant 0 : i32
    %c0_i32_0 = arith.constant 0 : i32
    %c0_i32_1 = arith.constant 0 : i32
    return %arg0, %c0_i32, %c0_i32_0 : i32, i32, i32
  }
  func.func @transform_2(%arg0: i32) -> (i32, i32) {
    %c0_i32 = arith.constant 0 : i32
    %c0_i32_0 = arith.constant 0 : i32
    %c0_i32_1 = arith.constant 0 : i32
    return %c0_i32, %c0_i32_0 : i32, i32
  }
  func.func @transform_3(%arg0: i32) -> (i32, i32) {
    %c0_i32 = arith.constant 0 : i32
    %c0_i32_0 = arith.constant 0 : i32
    %c0_i32_1 = arith.constant 0 : i32
    return %c0_i32, %c0_i32_0 : i32, i32
  }
  func.func @transform_4(%arg0: i32) -> (i32, i32) {
    %c0_i32 = arith.constant 0 : i32
    %c0_i32_0 = arith.constant 0 : i32
    %c0_i32_1 = arith.constant 0 : i32
    return %c0_i32, %c0_i32_0 : i32, i32
  }
  func.func @transform_5(%arg0: i32) -> (i32, i32) {
    %c0_i32 = arith.constant 0 : i32
    %c0_i32_0 = arith.constant 0 : i32
    %c0_i32_1 = arith.constant 0 : i32
    return %c0_i32, %c0_i32_0 : i32, i32
  }
  func.func @transform_6(%arg0: i32) -> (i32, i32) {
    %c0_i32 = arith.constant 0 : i32
    %c0_i32_0 = arith.constant 0 : i32
    %c0_i32_1 = arith.constant 0 : i32
    return %c0_i32, %c0_i32_0 : i32, i32
  }
  func.func @transform_7(%arg0: i32) -> (i32, i32) {
    %c0_i32 = arith.constant 0 : i32
    %c0_i32_0 = arith.constant 0 : i32
    %c0_i32_1 = arith.constant 0 : i32
    return %c0_i32, %c0_i32_0 : i32, i32
  }
  func.func @transform_8(%arg0: i32) -> (i32, i32, i32) {
    %c0_i32 = arith.constant 0 : i32
    %c0_i32_0 = arith.constant 0 : i32
    %c0_i32_1 = arith.constant 0 : i32
    return %arg0, %c0_i32, %c0_i32_0 : i32, i32, i32
  }
}

</mosaic_0001>

<llo_original>
// kernel: tpu_custom_call.1
$region0: #{tpu_custom_call.1}
  #allocation0 [shape = 'u32[]', space=smem, size = 0x4, offset = 0x4, fixed_abs, tag = 'smem constant byte address 0x4 - core index']
  #allocation1 [shape = 'u32[72,128]{1,0:T(1,128)}', space=vmem, size = 0x9000, scoped, tag = 'internal scratch']
  %s0 = inlined_call_operand.vmem [shape: f32[2,8,16], index: 0, kind: input, shape index: {}]
  %s1 = inlined_call_operand.vmem [shape: f32[2,8,8], index: 1, kind: input, shape index: {}]
  %s2 = inlined_call_operand.vmem [shape: f32[16,32], index: 2, kind: input, shape index: {}]
  %s3 = inlined_call_operand.vmem [shape: f32[1,32], index: 3, kind: input, shape index: {}]
  %s4 = inlined_call_operand.vmem [shape: f32[32,8], index: 4, kind: input, shape index: {}]
  %s5 = inlined_call_operand.vmem [shape: f32[32,8], index: 5, kind: input, shape index: {}]
  %s6 = inlined_call_operand.vmem [shape: f32[1,8], index: 6, kind: input, shape index: {}]
  %s7 = inlined_call_operand.vmem [shape: f32[8,8], index: 7, kind: input, shape index: {}]
  %s8 = inlined_call_operand.hbm [shape: f32[2,8,8], index: 8, kind: output, shape index: {}]
  %s9 = sld [smem:[#allocation0]]
  $region65: #{tpu_custom_call.1} parent=0
    _
  %s11 = ssub.s32 1, %s9
  %s12 = scalar_select 0, %s11, %s9
  $region1: #{tpu_custom_call.1} parent=0
    #allocation2 [shape = 'u8[8192]{0}', space=vmem, size = 0x2000, scoped, tag = 'output window, operand 0']
    #allocation3 [shape = 's32[2]{0}', space=sflag, size = 0x8, scoped, tag = 'scoped memory for tpu_custom_call.1']
    %13 = vsyncpa [#allocation3], 0
    %s14 = scalar_lea.sflag [#allocation3], 1
    %15 = vsyncpa %s14, 0
    loop: start=0, step=1, limit=4
    $region2: #{tpu_custom_call.1} parent=1 // loop_pre_header
      _
    $region3: #{tpu_custom_call.1} parent=1 // loop_header
      %s17 = sphi 0, %s21
      %p18 = scmp.ge.s32.totalorder %s17, 4
      %s27 = sphi 0, %s29
      %s30 = sphi 0, %s27
      %s31 = sphi 0, %s30
      %s47 = sphi 0, %s31
      %s53 = sphi 0, %s55
      %s56 = sphi 0, %s53
      %s57 = sphi 0, %s56
      %s73 = sphi 0, %s57
      %s77 = sphi 0, %s77
      %s79 = sphi 0, %s77
      %s80 = sphi 0, %s79
      %s94 = sphi 0, %s80
      %s98 = sphi 0, %s98
      %s100 = sphi 0, %s98
      %s101 = sphi 0, %s100
      %s115 = sphi 0, %s101
      %s119 = sphi 0, %s119
      %s121 = sphi 0, %s119
      %s122 = sphi 0, %s121
      %s136 = sphi 0, %s122
      %s140 = sphi 0, %s140
      %s142 = sphi 0, %s140
      %s143 = sphi 0, %s142
      %s157 = sphi 0, %s143
      %s161 = sphi 0, %s161
      %s163 = sphi 0, %s161
      %s164 = sphi 0, %s163
      %s178 = sphi 0, %s164
      %s182 = sphi 0, %s182
      %s184 = sphi 0, %s182
      %s185 = sphi 0, %s184
      %s199 = sphi 0, %s185
      %s205 = sphi 0, %s207
      %s208 = sphi 0, %s205
      %s209 = sphi 0, %s208
      %s225 = sphi 0, %s209
    $region4: #{tpu_custom_call.1} parent=1 // loop_header_branch
      %20 = sbr.rel (%p18) target = $region8
    $region5: #{tpu_custom_call.1} parent=1 // loop_body
      %s22 = ssub.s32 %s17, 1
      %s23 = ssub.s32 %s17, 2
      %s24 = sadd.s32 %s17, 1
      %s25 = ssub.s32 %s17, %s24
      %p26 = scmp.eq.s32.totalorder %s25, 0
      %s28 = sadd.s32 %s27, 1
      %s29 = scalar_select %p26, %s27, %s28
      %p32 = pneg %p26
      %p33 = scmp.eq.s32.totalorder %s17, 1
      %p34 = por %p32, %p33
      %p35 = scmp.ne.s32.totalorder %s27, %s30
      %p36 = scmp.eq.s32.totalorder %s17, 0
      %p37 = por %p35, %p36
      %p38 = scmp.ne.s32.totalorder %s27, %s30
      %p39 = scmp.eq.s32.totalorder %s22, 1
      %p40 = por %p38, %p39
      %p41 = scmp.ne.s32.totalorder %s30, %s31
      %p42 = scmp.eq.s32.totalorder %s22, 0
      %p43 = por %p41, %p42
      %p44 = scmp.ne.s32.totalorder %s30, %s31
      %p45 = scmp.eq.s32.totalorder %s23, 1
      %p46 = por %p44, %p45
      %p48 = scmp.ne.s32.totalorder %s31, %s47
      %p49 = scmp.eq.s32.totalorder %s23, 0
      %p50 = por %p48, %p49
      %s51 = ssub.s32 %s17, %s24
      %p52 = scmp.eq.s32.totalorder %s51, 0
      %s54 = sadd.s32 %s53, 1
      %s55 = scalar_select %p52, %s53, %s54
      %p58 = pneg %p52
      %p59 = scmp.eq.s32.totalorder %s17, 1
      %p60 = por %p58, %p59
      %p61 = scmp.ne.s32.totalorder %s53, %s56
      %p62 = scmp.eq.s32.totalorder %s17, 0
      %p63 = por %p61, %p62
      %p64 = scmp.ne.s32.totalorder %s53, %s56
      %p65 = scmp.eq.s32.totalorder %s22, 1
      %p66 = por %p64, %p65
      %p67 = scmp.ne.s32.totalorder %s56, %s57
      %p68 = scmp.eq.s32.totalorder %s22, 0
      %p69 = por %p67, %p68
      %p70 = scmp.ne.s32.totalorder %s56, %s57
      %p71 = scmp.eq.s32.totalorder %s23, 1
      %p72 = por %p70, %p71
      %p74 = scmp.ne.s32.totalorder %s57, %s73
      %p75 = scmp.eq.s32.totalorder %s23, 0
      %p76 = por %p74, %p75
      %s78 = sadd.s32 %s77, 1
      %p81 = scmp.eq.s32.totalorder %s17, 1
      %p82 = scmp.ne.s32.totalorder %s77, %s79
      %p83 = scmp.eq.s32.totalorder %s17, 0
      %p84 = por %p82, %p83
      %p85 = scmp.ne.s32.totalorder %s77, %s79
      %p86 = scmp.eq.s32.totalorder %s22, 1
      %p87 = por %p85, %p86
      %p88 = scmp.ne.s32.totalorder %s79, %s80
      %p89 = scmp.eq.s32.totalorder %s22, 0
      %p90 = por %p88, %p89
      %p91 = scmp.ne.s32.totalorder %s79, %s80
      %p92 = scmp.eq.s32.totalorder %s23, 1
      %p93 = por %p91, %p92
      %p95 = scmp.ne.s32.totalorder %s80, %s94
      %p96 = scmp.eq.s32.totalorder %s23, 0
      %p97 = por %p95, %p96
      %s99 = sadd.s32 %s98, 1
      %p102 = scmp.eq.s32.totalorder %s17, 1
      %p103 = scmp.ne.s32.totalorder %s98, %s100
      %p104 = scmp.eq.s32.totalorder %s17, 0
      %p105 = por %p103, %p104
      %p106 = scmp.ne.s32.totalorder %s98, %s100
      %p107 = scmp.eq.s32.totalorder %s22, 1
      %p108 = por %p106, %p107
      %p109 = scmp.ne.s32.totalorder %s100, %s101
      %p110 = scmp.eq.s32.totalorder %s22, 0
      %p111 = por %p109, %p110
      %p112 = scmp.ne.s32.totalorder %s100, %s101
      %p113 = scmp.eq.s32.totalorder %s23, 1
      %p114 = por %p112, %p113
      %p116 = scmp.ne.s32.totalorder %s101, %s115
      %p117 = scmp.eq.s32.totalorder %s23, 0
      %p118 = por %p116, %p117
      %s120 = sadd.s32 %s119, 1
      %p123 = scmp.eq.s32.totalorder %s17, 1
      %p124 = scmp.ne.s32.totalorder %s119, %s121
      %p125 = scmp.eq.s32.totalorder %s17, 0
      %p126 = por %p124, %p125
      %p127 = scmp.ne.s32.totalorder %s119, %s121
      %p128 = scmp.eq.s32.totalorder %s22, 1
      %p129 = por %p127, %p128
      %p130 = scmp.ne.s32.totalorder %s121, %s122
      %p131 = scmp.eq.s32.totalorder %s22, 0
      %p132 = por %p130, %p131
      %p133 = scmp.ne.s32.totalorder %s121, %s122
      %p134 = scmp.eq.s32.totalorder %s23, 1
      %p135 = por %p133, %p134
      %p137 = scmp.ne.s32.totalorder %s122, %s136
      %p138 = scmp.eq.s32.totalorder %s23, 0
      %p139 = por %p137, %p138
      %s141 = sadd.s32 %s140, 1
      %p144 = scmp.eq.s32.totalorder %s17, 1
      %p145 = scmp.ne.s32.totalorder %s140, %s142
      %p146 = scmp.eq.s32.totalorder %s17, 0
      %p147 = por %p145, %p146
      %p148 = scmp.ne.s32.totalorder %s140, %s142
      %p149 = scmp.eq.s32.totalorder %s22, 1
      %p150 = por %p148, %p149
      %p151 = scmp.ne.s32.totalorder %s142, %s143
      %p152 = scmp.eq.s32.totalorder %s22, 0
      %p153 = por %p151, %p152
      %p154 = scmp.ne.s32.totalorder %s142, %s143
      %p155 = scmp.eq.s32.totalorder %s23, 1
      %p156 = por %p154, %p155
      %p158 = scmp.ne.s32.totalorder %s143, %s157
      %p159 = scmp.eq.s32.totalorder %s23, 0
      %p160 = por %p158, %p159
      %s162 = sadd.s32 %s161, 1
      %p165 = scmp.eq.s32.totalorder %s17, 1
      %p166 = scmp.ne.s32.totalorder %s161, %s163
      %p167 = scmp.eq.s32.totalorder %s17, 0
      %p168 = por %p166, %p167
      %p169 = scmp.ne.s32.totalorder %s161, %s163
      %p170 = scmp.eq.s32.totalorder %s22, 1
      %p171 = por %p169, %p170
      %p172 = scmp.ne.s32.totalorder %s163, %s164
      %p173 = scmp.eq.s32.totalorder %s22, 0
      %p174 = por %p172, %p173
      %p175 = scmp.ne.s32.totalorder %s163, %s164
      %p176 = scmp.eq.s32.totalorder %s23, 1
      %p177 = por %p175, %p176
      %p179 = scmp.ne.s32.totalorder %s164, %s178
      %p180 = scmp.eq.s32.totalorder %s23, 0
      %p181 = por %p179, %p180
      %s183 = sadd.s32 %s182, 1
      %p186 = scmp.eq.s32.totalorder %s17, 1
      %p187 = scmp.ne.s32.totalorder %s182, %s184
      %p188 = scmp.eq.s32.totalorder %s17, 0
      %p189 = por %p187, %p188
      %p190 = scmp.ne.s32.totalorder %s182, %s184
      %p191 = scmp.eq.s32.totalorder %s22, 1
      %p192 = por %p190, %p191
      %p193 = scmp.ne.s32.totalorder %s184, %s185
      %p194 = scmp.eq.s32.totalorder %s22, 0
      %p195 = por %p193, %p194
      %p196 = scmp.ne.s32.totalorder %s184, %s185
      %p197 = scmp.eq.s32.totalorder %s23, 1
      %p198 = por %p196, %p197
      %p200 = scmp.ne.s32.totalorder %s185, %s199
      %p201 = scmp.eq.s32.totalorder %s23, 0
      %p202 = por %p200, %p201
      %s203 = ssub.s32 %s17, %s24
      %p204 = scmp.eq.s32.totalorder %s203, 0
      %s206 = sadd.s32 %s205, 1
      %s207 = scalar_select %p204, %s205, %s206
      %p210 = pneg %p204
      %p211 = scmp.eq.s32.totalorder %s17, 1
      %p212 = por %p210, %p211
      %p213 = scmp.ne.s32.totalorder %s205, %s208
      %p214 = scmp.eq.s32.totalorder %s17, 0
      %p215 = por %p213, %p214
      %p216 = scmp.ne.s32.totalorder %s205, %s208
      %p217 = scmp.eq.s32.totalorder %s22, 1
      %p218 = por %p216, %p217
      %p219 = scmp.ne.s32.totalorder %s208, %s209
      %p220 = scmp.eq.s32.totalorder %s22, 0
      %p221 = por %p219, %p220
      %p222 = scmp.ne.s32.totalorder %s208, %s209
      %p223 = scmp.eq.s32.totalorder %s23, 1
      %p224 = por %p222, %p223
      %p226 = scmp.ne.s32.totalorder %s209, %s225
      %p227 = scmp.eq.s32.totalorder %s23, 0
      %p228 = por %p226, %p227
      %p229 = scmp.le.s32.totalorder 1, %s17
      %p230 = scmp.lt.s32.totalorder %s17, 3
      %p231 = pnand %p229, %p230
      %p232 = pneg %p231
      // Predicated region
      $region9: #{tpu_custom_call.1} parent=5 // pred_check
        _
      $region10: #{tpu_custom_call.1} parent=5 // pred_check_branch
        %234 = sbr.rel (%p231) target = $region12
      $region11: #{tpu_custom_call.1} parent=5 // pred_region
        %s235 = ssub.s32 %s17, 1
        // Predicated region
        $region13: #{tpu_custom_call.1} parent=11 // pred_check
          %p236 = pneg %p90
        $region14: #{tpu_custom_call.1} parent=11 // pred_check_branch
          %238 = sbr.rel (%p236) target = $region16
        $region15: #{tpu_custom_call.1} parent=11 // pred_region
          _
        $region16: #{tpu_custom_call.1} parent=11 // pred_fallthru
          _
        // Predicated region
        $region17: #{tpu_custom_call.1} parent=11 // pred_check
          %p239 = pneg %p111
        $region18: #{tpu_custom_call.1} parent=11 // pred_check_branch
          %241 = sbr.rel (%p239) target = $region20
        $region19: #{tpu_custom_call.1} parent=11 // pred_region
          _
        $region20: #{tpu_custom_call.1} parent=11 // pred_fallthru
          _
        // Predicated region
        $region21: #{tpu_custom_call.1} parent=11 // pred_check
          %p242 = pneg %p132
        $region22: #{tpu_custom_call.1} parent=11 // pred_check_branch
          %244 = sbr.rel (%p242) target = $region24
        $region23: #{tpu_custom_call.1} parent=11 // pred_region
          _
        $region24: #{tpu_custom_call.1} parent=11 // pred_fallthru
          _
        // Predicated region
        $region25: #{tpu_custom_call.1} parent=11 // pred_check
          %p245 = pneg %p153
        $region26: #{tpu_custom_call.1} parent=11 // pred_check_branch
          %247 = sbr.rel (%p245) target = $region28
        $region27: #{tpu_custom_call.1} parent=11 // pred_region
          _
        $region28: #{tpu_custom_call.1} parent=11 // pred_fallthru
          _
        // Predicated region
        $region29: #{tpu_custom_call.1} parent=11 // pred_check
          %p248 = pneg %p174
        $region30: #{tpu_custom_call.1} parent=11 // pred_check_branch
          %250 = sbr.rel (%p248) target = $region32
        $region31: #{tpu_custom_call.1} parent=11 // pred_region
          _
        $region32: #{tpu_custom_call.1} parent=11 // pred_fallthru
          _
        // Predicated region
        $region33: #{tpu_custom_call.1} parent=11 // pred_check
          %p251 = pneg %p195
        $region34: #{tpu_custom_call.1} parent=11 // pred_check_branch
          %253 = sbr.rel (%p251) target = $region36
        $region35: #{tpu_custom_call.1} parent=11 // pred_region
          _
        $region36: #{tpu_custom_call.1} parent=11 // pred_fallthru
          _
      $region12: #{tpu_custom_call.1} parent=5 // pred_fallthru
        _
      %p254 = scmp.lt.s32.totalorder %s17, 2
      // Predicated region
      $region37: #{tpu_custom_call.1} parent=5 // pred_check
        %p255 = pneg %p254
      $region38: #{tpu_custom_call.1} parent=5 // pred_check_branch
        %257 = sbr.rel (%p255) target = $region40
      $region39: #{tpu_custom_call.1} parent=5 // pred_region
        // Predicated region
        $region41: #{tpu_custom_call.1} parent=39 // pred_check
          %p258 = pneg %p37
        $region42: #{tpu_custom_call.1} parent=39 // pred_check_branch
          %260 = sbr.rel (%p258) target = $region44
        $region43: #{tpu_custom_call.1} parent=39 // pred_region
          %p261 = scmp.lt.s32.totalorder %s17, 1
          %s262 = scalar_select %p261, %s17, 1
          %s263 = smul.addr %s262, 8
          %s264 = scalar_lea.vmem %s0, %s263
        $region44: #{tpu_custom_call.1} parent=39 // pred_fallthru
          _
        // Predicated region
        $region45: #{tpu_custom_call.1} parent=39 // pred_check
          %p265 = pneg %p63
        $region46: #{tpu_custom_call.1} parent=39 // pred_check_branch
          %267 = sbr.rel (%p265) target = $region48
        $region47: #{tpu_custom_call.1} parent=39 // pred_region
          %p268 = scmp.lt.s32.totalorder %s17, 1
          %s269 = scalar_select %p268, %s17, 1
          %s270 = smul.addr %s269, 8
          %s271 = scalar_lea.vmem %s1, %s270
        $region48: #{tpu_custom_call.1} parent=39 // pred_fallthru
          _
      $region40: #{tpu_custom_call.1} parent=5 // pred_fallthru
        _
      %p272 = scmp.le.s32.totalorder 1, %s17
      %p273 = scmp.lt.s32.totalorder %s17, 3
      %p274 = pnand %p272, %p273
      %p275 = pneg %p274
      // Predicated region
      $region49: #{tpu_custom_call.1} parent=5 // pred_check
        _
      $region50: #{tpu_custom_call.1} parent=5 // pred_check_branch
        %277 = sbr.rel (%p274) target = $region52
      $region51: #{tpu_custom_call.1} parent=5 // pred_region
        %s278 = ssub.s32 %s17, 1
        %p279 = scmp.lt.s32.totalorder %s22, 1
        %s280 = scalar_select %p279, %s22, 1
        %s281 = smul.addr %s280, 8
        %s282 = scalar_lea.vmem %s0, %s281
        %p283 = pneg %p43
        %p284 = pneg %p40
        %p285 = scmp.lt.s32.totalorder %s22, 1
        %s286 = scalar_select %p285, %s22, 1
        %s287 = smul.addr %s286, 8
        %s288 = scalar_lea.vmem %s1, %s287
        %p289 = pneg %p69
        %p290 = pneg %p66
        %p291 = pneg %p90
        %p292 = pneg %p87
        %p293 = pneg %p111
        %p294 = pneg %p108
        %p295 = pneg %p132
        %p296 = pneg %p129
        %p297 = pneg %p153
        %p298 = pneg %p150
        %p299 = pneg %p174
        %p300 = pneg %p171
        %p301 = pneg %p195
        %p302 = pneg %p192
        %p303 = pneg %p221
        %p304 = pneg %p218
        %s305 = sand.u32 %s208, 1
        %s306 = scalar_lea.sflag [#allocation3], %s305
        %s307 = sand.u32 %s208, 1
        %s308 = smul.addr %s307, 8
        %s309 = scalar_lea.vmem [#allocation2], %s308
        %p310 = scmp.lt.s32.totalorder %s22, 1
        %s311 = scalar_select %p310, %s22, 1
        %s312 = smul.addr %s311, 8
        %s313 = scalar_lea.vmem %s0, %s312
        %p314 = scmp.lt.s32.totalorder %s22, 1
        %s315 = scalar_select %p314, %s22, 1
        %s316 = smul.addr %s315, 8
        %s317 = scalar_lea.vmem %s1, %s316
        %v318 = vld [vmem:[%s313] sm:$0xff]
        %v319 = vld [vmem:[%s317] sm:$0xff]
        %vm320 = vcmp.eq.f32.partialorder %v319, 1.0
        %v321 = vsel %vm320, 0.0, -9e+15
        %v322 = vld [vmem:[%s2] sm:$0xff]
        %v323 = vld [vmem:[%s2 + $0x8] sm:$0xff]
        %v324 = vld [vmem:[%s3] sm:$0x1]
        %v325 = vld [vmem:[%s4] sm:$0xff]
        %v326 = vld [vmem:[%s4 + $0x8] sm:$0xff]
        %v327 = vld [vmem:[%s4 + $0x10] sm:$0xff]
        %v328 = vld [vmem:[%s4 + $0x18] sm:$0xff]
        %v330 = vperm.slane %v324, 0
        %vm332 = vcmask 130048
        %v334 = vsel %vm332, %v318, 0
        %336 = vmatpush.msra.mxu0 0.0
        %337 = vmatpush.msra.mxu0 0.0
        %338 = vmatpush.msra.mxu0 0.0
        %339 = vmatpush.msra.mxu0 0.0
        %340 = vmatpush.msra.mxu0 0.0
        %341 = vmatpush.msra.mxu0 0.0
        %342 = vmatpush.msra.mxu0 0.0
        %343 = vmatpush.msra.mxu0 0.0
        %344 = vmatpush.msra.mxu0 0.0
        %345 = vmatpush.msra.mxu0 0.0
        %346 = vmatpush.msra.mxu0 0.0
        %347 = vmatpush.msra.mxu0 0.0
        %348 = vmatpush.msra.mxu0 0.0
        %349 = vmatpush.msra.mxu0 0.0
        %350 = vmatpush.msra.mxu0 %v323
        %351 = vmatpush.msra.mxu0 %v322
        %352 = vmatmul.f32.gmra.mxu0 %v334
        %v353 = vpop.f32.mrf.mxu0
        %v354 = vadd.f32 %v330, %v353
        %355 = vdwg.mxu0
        %vm356 = vcmask 261120
        %v358 = vsel %vm356, %v354, 0
        %360 = vmatpush.msra.mxu0 0.0
        %361 = vmatpush.msra.mxu0 0.0
        %362 = vmatpush.msra.mxu0 0.0
        %363 = vmatpush.msra.mxu0 0.0
        %364 = vmatpush.msra.mxu0 0.0
        %365 = vmatpush.msra.mxu0 0.0
        %366 = vmatpush.msra.mxu0 0.0
        %367 = vmatpush.msra.mxu0 0.0
        %368 = vmatpush.msra.mxu0 0.0
        %369 = vmatpush.msra.mxu0 0.0
        %370 = vmatpush.msra.mxu0 0.0
        %371 = vmatpush.msra.mxu0 0.0
        %372 = vmatpush.msra.mxu0 %v328
        %373 = vmatpush.msra.mxu0 %v327
        %374 = vmatpush.msra.mxu0 %v326
        %375 = vmatpush.msra.mxu0 %v325
        %376 = vmatmul.f32.gmra.mxu0 %v358
        %v377 = vpop.f32.mrf.mxu0
        %v378 = vadd.f32 0.0, %v377
        %379 = vdwg.mxu0
        %380 = vxpose.xlu0.b32.start [1/16] %v378, 128
        %381 = vxpose.xlu0.b32.cont [2/16] 0.0, 128
        %382 = vxpose.xlu0.b32.cont [3/16] 0.0, 128
        %383 = vxpose.xlu0.b32.cont [4/16] 0.0, 128
        %384 = vxpose.xlu0.b32.cont [5/16] 0.0, 128
        %385 = vxpose.xlu0.b32.cont [6/16] 0.0, 128
        %386 = vxpose.xlu0.b32.cont [7/16] 0.0, 128
        %387 = vxpose.xlu0.b32.cont [8/16] 0.0, 128
        %388 = vxpose.xlu0.b32.cont [9/16] 0.0, 128
        %389 = vxpose.xlu0.b32.cont [10/16] 0.0, 128
        %390 = vxpose.xlu0.b32.cont [11/16] 0.0, 128
        %391 = vxpose.xlu0.b32.cont [12/16] 0.0, 128
        %392 = vxpose.xlu0.b32.cont [13/16] 0.0, 128
        %393 = vxpose.xlu0.b32.cont [14/16] 0.0, 128
        %394 = vxpose.xlu0.b32.cont [15/16] 0.0, 128
        %395 = vxpose.xlu0.b32.end [16/16] 0.0, 128
        %v396 = vpop.trf.xlu0
        %v397 = vpop.trf.xlu0
        %v398 = vpop.trf.xlu0
        %v399 = vpop.trf.xlu0
        %v400 = vpop.trf.xlu0
        %v401 = vpop.trf.xlu0
        %v402 = vpop.trf.xlu0
        %v403 = vpop.trf.xlu0
        %v404 = vpop.trf.xlu0
        %v405 = vpop.trf.xlu0
        %v406 = vpop.trf.xlu0
        %v407 = vpop.trf.xlu0
        %v408 = vpop.trf.xlu0
        %v409 = vpop.trf.xlu0
        %v410 = vpop.trf.xlu0
        %v411 = vpop.trf.xlu0
        %v412 = vperm.slane %v396, 0
        %v413 = vlaneseq
        %v414 = vshrl.u32 %v413, 7
        %416 = vset.pattern.permute.xlu0 %v414
        %417 = vperm.xlu0 %416, %v412
        %v418 = vpop.permute.xlu0 %417
        %v419 = vperm.slane %v396, 1
        %v420 = vlaneseq
        %v421 = vshrl.u32 %v420, 7
        %423 = vset.pattern.permute.xlu0 %v421
        %424 = vperm.xlu0 %423, %v419
        %v425 = vpop.permute.xlu0 %424
        %v426 = vperm.slane %v396, 2
        %v427 = vlaneseq
        %v428 = vshrl.u32 %v427, 7
        %430 = vset.pattern.permute.xlu0 %v428
        %431 = vperm.xlu0 %430, %v426
        %v432 = vpop.permute.xlu0 %431
        %v433 = vperm.slane %v396, 3
        %v434 = vlaneseq
        %v435 = vshrl.u32 %v434, 7
        %437 = vset.pattern.permute.xlu0 %v435
        %438 = vperm.xlu0 %437, %v433
        %v439 = vpop.permute.xlu0 %438
        %441 = vst [vmem:[#allocation1] sm:$0xff] %v396
        %s442 = scalar_lea.vmem [#allocation1], 4
        %v443 = vld [vmem:[%s442] ss:$9 sm:$0xff]
        %s444 = scalar_lea.vmem [#allocation1], 5
        %v445 = vld [vmem:[%s444] ss:$9 sm:$0xff]
        %s446 = scalar_lea.vmem [#allocation1], 6
        %v447 = vld [vmem:[%s446] ss:$9 sm:$0xff]
        %s448 = scalar_lea.vmem [#allocation1], 7
        %v449 = vld [vmem:[%s448] ss:$9 sm:$0xff]
        %v450 = vperm.slane %v443, 0
        %v451 = vperm.slane %v445, 0
        %v452 = vperm.slane %v447, 0
        %v453 = vperm.slane %v449, 0
        %v458 = vadd.f32 %v418, %v450
        %v459 = vadd.f32 %v425, %v451
        %v460 = vadd.f32 %v432, %v452
        %v461 = vadd.f32 %v439, %v453
        %vm462 = vcmp.gt.f32.partialorder %v458, 0.0
        %vm463 = vcmp.gt.f32.partialorder %v459, 0.0
        %vm464 = vcmp.gt.f32.partialorder %v460, 0.0
        %vm465 = vcmp.gt.f32.partialorder %v461, 0.0
        %v466 = vmul.f32 %v458, 0.2
        %v467 = vmul.f32 %v459, 0.2
        %v468 = vmul.f32 %v460, 0.2
        %v469 = vmul.f32 %v461, 0.2
        %v470 = vsel %vm462, %v458, %v466
        %v471 = vsel %vm463, %v459, %v467
        %v472 = vsel %vm464, %v460, %v468
        %v473 = vsel %vm465, %v461, %v469
        %v474 = vadd.f32 %v470, %v321
        %v475 = vadd.f32 %v471, %v321
        %v476 = vadd.f32 %v472, %v321
        %v477 = vadd.f32 %v473, %v321
        %vm478 = vcmask 64512
        %v479 = vsel %vm478, %v474, -inf
        %480 = vmax.xlane.f32.xlu0 %v479
        %v481 = vpop.xlane.xlu0 %480
        %v482 = vsel %vm478, %v475, -inf
        %483 = vmax.xlane.f32.xlu0 %v482
        %v484 = vpop.xlane.xlu0 %483
        %v485 = vsel %vm478, %v476, -inf
        %486 = vmax.xlane.f32.xlu0 %v485
        %v487 = vpop.xlane.xlu0 %486
        %v488 = vsel %vm478, %v477, -inf
        %489 = vmax.xlane.f32.xlu0 %v488
        %v490 = vpop.xlane.xlu0 %489
        %v491 = vsub.f32 %v474, %v481
        %v492 = vsub.f32 %v475, %v484
        %v493 = vsub.f32 %v476, %v487
        %v494 = vsub.f32 %v477, %v490
        %v495 = vmul.f32 %v491, 1.442695
        %v496 = vpow.pop %v495
        %v497 = vmul.f32 %v492, 1.442695
        %v498 = vpow.pop %v497
        %v499 = vmul.f32 %v493, 1.442695
        %v500 = vpow.pop %v499
        %v501 = vmul.f32 %v494, 1.442695
        %v502 = vpow.pop %v501
        %v503 = vsel %vm478, %v496, 0.0
        %504 = vadd.xlane.f32.xlu0 %v503
        %v505 = vpop.xlane.xlu0 %504
        %v506 = vsel %vm478, %v498, 0.0
        %507 = vadd.xlane.f32.xlu0 %v506
        %v508 = vpop.xlane.xlu0 %507
        %v509 = vsel %vm478, %v500, 0.0
        %510 = vadd.xlane.f32.xlu0 %v509
        %v511 = vpop.xlane.xlu0 %510
        %v512 = vsel %vm478, %v502, 0.0
        %513 = vadd.xlane.f32.xlu0 %v512
        %v514 = vpop.xlane.xlu0 %513
        %v515 = vrcp.pop %v505
        %v516 = vrcp.pop %v508
        %v517 = vrcp.pop %v511
        %v518 = vrcp.pop %v514
        %v519 = vmul.f32 %v496, %v515
        %v520 = vmul.f32 %v498, %v516
        %v521 = vmul.f32 %v500, %v517
        %v522 = vmul.f32 %v502, %v518
        %v524 = vsel %vm478, %v519, 0
        %526 = vmatpush.msra.mxu0 0.0
        %527 = vmatpush.msra.mxu0 0.0
        %528 = vmatpush.msra.mxu0 0.0
        %529 = vmatpush.msra.mxu0 0.0
        %530 = vmatpush.msra.mxu0 0.0
        %531 = vmatpush.msra.mxu0 0.0
        %532 = vmatpush.msra.mxu0 0.0
        %533 = vmatpush.msra.mxu0 0.0
        %534 = vmatpush.msra.mxu0 0.0
        %535 = vmatpush.msra.mxu0 0.0
        %536 = vmatpush.msra.mxu0 0.0
        %537 = vmatpush.msra.mxu0 0.0
        %538 = vmatpush.msra.mxu0 0.0
        %539 = vmatpush.msra.mxu0 0.0
        %540 = vmatpush.msra.mxu0 0.0
        %541 = vmatpush.msra.mxu0 %v354
        %542 = vmatmul.f32.gmra.mxu0 %v524
        %v543 = vpop.f32.mrf.mxu0
        %v544 = vadd.f32 0.0, %v543
        %545 = vdwg.mxu0
        %546 = vrot.lane.b32.xlu0 %v354, 120
        %v547 = vpop.permute.xlu0 %546
        %v550 = vsel %vm478, %v520, 0
        %552 = vmatpush.msra.mxu0 0.0
        %553 = vmatpush.msra.mxu0 0.0
        %554 = vmatpush.msra.mxu0 0.0
        %555 = vmatpush.msra.mxu0 0.0
        %556 = vmatpush.msra.mxu0 0.0
        %557 = vmatpush.msra.mxu0 0.0
        %558 = vmatpush.msra.mxu0 0.0
        %559 = vmatpush.msra.mxu0 0.0
        %560 = vmatpush.msra.mxu0 0.0
        %561 = vmatpush.msra.mxu0 0.0
        %562 = vmatpush.msra.mxu0 0.0
        %563 = vmatpush.msra.mxu0 0.0
        %564 = vmatpush.msra.mxu0 0.0
        %565 = vmatpush.msra.mxu0 0.0
        %566 = vmatpush.msra.mxu0 0.0
        %567 = vmatpush.msra.mxu0 %v547
        %568 = vmatmul.f32.gmra.mxu0 %v550
        %v569 = vpop.f32.mrf.mxu0
        %v570 = vadd.f32 0.0, %v569
        %571 = vdwg.mxu0
        %572 = vrot.lane.b32.xlu0 %v354, 112
        %v573 = vpop.permute.xlu0 %572
        %v576 = vsel %vm478, %v521, 0
        %578 = vmatpush.msra.mxu0 0.0
        %579 = vmatpush.msra.mxu0 0.0
        %580 = vmatpush.msra.mxu0 0.0
        %581 = vmatpush.msra.mxu0 0.0
        %582 = vmatpush.msra.mxu0 0.0
        %583 = vmatpush.msra.mxu0 0.0
        %584 = vmatpush.msra.mxu0 0.0
        %585 = vmatpush.msra.mxu0 0.0
        %586 = vmatpush.msra.mxu0 0.0
        %587 = vmatpush.msra.mxu0 0.0
        %588 = vmatpush.msra.mxu0 0.0
        %589 = vmatpush.msra.mxu0 0.0
        %590 = vmatpush.msra.mxu0 0.0
        %591 = vmatpush.msra.mxu0 0.0
        %592 = vmatpush.msra.mxu0 0.0
        %593 = vmatpush.msra.mxu0 %v573
        %594 = vmatmul.f32.gmra.mxu0 %v576
        %v595 = vpop.f32.mrf.mxu0
        %v596 = vadd.f32 0.0, %v595
        %597 = vdwg.mxu0
        %598 = vrot.lane.b32.xlu0 %v354, 104
        %v599 = vpop.permute.xlu0 %598
        %v602 = vsel %vm478, %v522, 0
        %604 = vmatpush.msra.mxu0 0.0
        %605 = vmatpush.msra.mxu0 0.0
        %606 = vmatpush.msra.mxu0 0.0
        %607 = vmatpush.msra.mxu0 0.0
        %608 = vmatpush.msra.mxu0 0.0
        %609 = vmatpush.msra.mxu0 0.0
        %610 = vmatpush.msra.mxu0 0.0
        %611 = vmatpush.msra.mxu0 0.0
        %612 = vmatpush.msra.mxu0 0.0
        %613 = vmatpush.msra.mxu0 0.0
        %614 = vmatpush.msra.mxu0 0.0
        %615 = vmatpush.msra.mxu0 0.0
        %616 = vmatpush.msra.mxu0 0.0
        %617 = vmatpush.msra.mxu0 0.0
        %618 = vmatpush.msra.mxu0 0.0
        %619 = vmatpush.msra.mxu0 %v599
        %620 = vmatmul.f32.gmra.mxu0 %v602
        %v621 = vpop.f32.mrf.mxu0
        %v622 = vadd.f32 0.0, %v621
        %623 = vdwg.mxu0
        %625 = vrot.lane.b32.xlu0 %v570, 8
        %v626 = vpop.permute.xlu0 %625
        %629 = vrot.lane.b32.xlu0 %v596, 16
        %v630 = vpop.permute.xlu0 %629
        %633 = vrot.lane.b32.xlu0 %v622, 24
        %v634 = vpop.permute.xlu0 %633
        %v636 = vsel %vm478, %v544, %v626
        %v637 = vsel %vm332, %v636, %v630
        %vm638 = vcmask 195584
        %v639 = vsel %vm638, %v637, %v634
        %vm640 = vcmp.gt.f32.partialorder %v639, 0.0
        %v641 = vmin.f32 %v639, 0.0
        %v642 = vmul.f32 %v641, 1.442695
        %v643 = vpow.pop %v642
        %v644 = vsub.f32 %v643, 1.0
        %v645 = vsel %vm640, %v639, %v644
        %v646 = vld [vmem:[%s5] sm:$0xff]
        %v647 = vld [vmem:[%s5 + $0x8] sm:$0xff]
        %v648 = vld [vmem:[%s5 + $0x10] sm:$0xff]
        %v649 = vld [vmem:[%s5 + $0x18] sm:$0xff]
        %v650 = vld [vmem:[%s6] sm:$0x1]
        %v651 = vld [vmem:[%s7] sm:$0xff]
        %v653 = vperm.slane %v650, 0
        %v656 = vsel %vm356, %v645, 0
        %658 = vmatpush.msra.mxu0 0.0
        %659 = vmatpush.msra.mxu0 0.0
        %660 = vmatpush.msra.mxu0 0.0
        %661 = vmatpush.msra.mxu0 0.0
        %662 = vmatpush.msra.mxu0 0.0
        %663 = vmatpush.msra.mxu0 0.0
        %664 = vmatpush.msra.mxu0 0.0
        %665 = vmatpush.msra.mxu0 0.0
        %666 = vmatpush.msra.mxu0 0.0
        %667 = vmatpush.msra.mxu0 0.0
        %668 = vmatpush.msra.mxu0 0.0
        %669 = vmatpush.msra.mxu0 0.0
        %670 = vmatpush.msra.mxu0 %v649
        %671 = vmatpush.msra.mxu0 %v648
        %672 = vmatpush.msra.mxu0 %v647
        %673 = vmatpush.msra.mxu0 %v646
        %674 = vmatmul.f32.gmra.mxu0 %v656
        %v675 = vpop.f32.mrf.mxu0
        %v676 = vadd.f32 %v653, %v675
        %677 = vdwg.mxu0
        %v679 = vsel %vm478, %v676, 0
        %681 = vmatpush.msra.mxu0 0.0
        %682 = vmatpush.msra.mxu0 0.0
        %683 = vmatpush.msra.mxu0 0.0
        %684 = vmatpush.msra.mxu0 0.0
        %685 = vmatpush.msra.mxu0 0.0
        %686 = vmatpush.msra.mxu0 0.0
        %687 = vmatpush.msra.mxu0 0.0
        %688 = vmatpush.msra.mxu0 0.0
        %689 = vmatpush.msra.mxu0 0.0
        %690 = vmatpush.msra.mxu0 0.0
        %691 = vmatpush.msra.mxu0 0.0
        %692 = vmatpush.msra.mxu0 0.0
        %693 = vmatpush.msra.mxu0 0.0
        %694 = vmatpush.msra.mxu0 0.0
        %695 = vmatpush.msra.mxu0 0.0
        %696 = vmatpush.msra.mxu0 %v651
        %697 = vmatmul.f32.gmra.mxu0 %v679
        %v698 = vpop.f32.mrf.mxu0
        %v699 = vadd.f32 0.0, %v698
        %700 = vdwg.mxu0
        %701 = vxpose.xlu0.b32.start [1/16] %v699, 128
        %702 = vxpose.xlu0.b32.cont [2/16] 0.0, 128
        %703 = vxpose.xlu0.b32.cont [3/16] 0.0, 128
        %704 = vxpose.xlu0.b32.cont [4/16] 0.0, 128
        %705 = vxpose.xlu0.b32.cont [5/16] 0.0, 128
        %706 = vxpose.xlu0.b32.cont [6/16] 0.0, 128
        %707 = vxpose.xlu0.b32.cont [7/16] 0.0, 128
        %708 = vxpose.xlu0.b32.cont [8/16] 0.0, 128
        %709 = vxpose.xlu0.b32.cont [9/16] 0.0, 128
        %710 = vxpose.xlu0.b32.cont [10/16] 0.0, 128
        %711 = vxpose.xlu0.b32.cont [11/16] 0.0, 128
        %712 = vxpose.xlu0.b32.cont [12/16] 0.0, 128
        %713 = vxpose.xlu0.b32.cont [13/16] 0.0, 128
        %714 = vxpose.xlu0.b32.cont [14/16] 0.0, 128
        %715 = vxpose.xlu0.b32.cont [15/16] 0.0, 128
        %716 = vxpose.xlu0.b32.end [16/16] 0.0, 128
        %v717 = vpop.trf.xlu0
        %v718 = vpop.trf.xlu0
        %v719 = vpop.trf.xlu0
        %v720 = vpop.trf.xlu0
        %v721 = vpop.trf.xlu0
        %v722 = vpop.trf.xlu0
        %v723 = vpop.trf.xlu0
        %v724 = vpop.trf.xlu0
        %v725 = vpop.trf.xlu0
        %v726 = vpop.trf.xlu0
        %v727 = vpop.trf.xlu0
        %v728 = vpop.trf.xlu0
        %v729 = vpop.trf.xlu0
        %v730 = vpop.trf.xlu0
        %v731 = vpop.trf.xlu0
        %v732 = vpop.trf.xlu0
        %v733 = vperm.slane %v717, 0
        %v734 = vlaneseq
        %v735 = vshrl.u32 %v734, 7
        %737 = vset.pattern.permute.xlu0 %v735
        %738 = vperm.xlu0 %737, %v733
        %v739 = vpop.permute.xlu0 %738
        %v740 = vperm.slane %v717, 1
        %v741 = vlaneseq
        %v742 = vshrl.u32 %v741, 7
        %744 = vset.pattern.permute.xlu0 %v742
        %745 = vperm.xlu0 %744, %v740
        %v746 = vpop.permute.xlu0 %745
        %v747 = vperm.slane %v717, 2
        %v748 = vlaneseq
        %v749 = vshrl.u32 %v748, 7
        %751 = vset.pattern.permute.xlu0 %v749
        %752 = vperm.xlu0 %751, %v747
        %v753 = vpop.permute.xlu0 %752
        %v754 = vperm.slane %v717, 3
        %v755 = vlaneseq
        %v756 = vshrl.u32 %v755, 7
        %758 = vset.pattern.permute.xlu0 %v756
        %759 = vperm.xlu0 %758, %v754
        %v760 = vpop.permute.xlu0 %759
        %762 = vst [vmem:[#allocation1] sm:$0xff] %v717
        %s763 = scalar_lea.vmem [#allocation1], 4
        %v764 = vld [vmem:[%s763] ss:$9 sm:$0xff]
        %s765 = scalar_lea.vmem [#allocation1], 5
        %v766 = vld [vmem:[%s765] ss:$9 sm:$0xff]
        %s767 = scalar_lea.vmem [#allocation1], 6
        %v768 = vld [vmem:[%s767] ss:$9 sm:$0xff]
        %s769 = scalar_lea.vmem [#allocation1], 7
        %v770 = vld [vmem:[%s769] ss:$9 sm:$0xff]
        %v771 = vperm.slane %v764, 0
        %v772 = vperm.slane %v766, 0
        %v773 = vperm.slane %v768, 0
        %v774 = vperm.slane %v770, 0
        %v779 = vadd.f32 %v739, %v771
        %v780 = vadd.f32 %v746, %v772
        %v781 = vadd.f32 %v753, %v773
        %v782 = vadd.f32 %v760, %v774
        %vm783 = vcmp.gt.f32.partialorder %v779, 0.0
        %vm784 = vcmp.gt.f32.partialorder %v780, 0.0
        %vm785 = vcmp.gt.f32.partialorder %v781, 0.0
        %vm786 = vcmp.gt.f32.partialorder %v782, 0.0
        %v787 = vmul.f32 %v779, 0.2
        %v788 = vmul.f32 %v780, 0.2
        %v789 = vmul.f32 %v781, 0.2
        %v790 = vmul.f32 %v782, 0.2
        %v791 = vsel %vm783, %v779, %v787
        %v792 = vsel %vm784, %v780, %v788
        %v793 = vsel %vm785, %v781, %v789
        %v794 = vsel %vm786, %v782, %v790
        %v795 = vadd.f32 %v791, %v321
        %v796 = vadd.f32 %v792, %v321
        %v797 = vadd.f32 %v793, %v321
        %v798 = vadd.f32 %v794, %v321
        %v799 = vsel %vm478, %v795, -inf
        %800 = vmax.xlane.f32.xlu0 %v799
        %v801 = vpop.xlane.xlu0 %800
        %v802 = vsel %vm478, %v796, -inf
        %803 = vmax.xlane.f32.xlu0 %v802
        %v804 = vpop.xlane.xlu0 %803
        %v805 = vsel %vm478, %v797, -inf
        %806 = vmax.xlane.f32.xlu0 %v805
        %v807 = vpop.xlane.xlu0 %806
        %v808 = vsel %vm478, %v798, -inf
        %809 = vmax.xlane.f32.xlu0 %v808
        %v810 = vpop.xlane.xlu0 %809
        %v811 = vsub.f32 %v795, %v801
        %v812 = vsub.f32 %v796, %v804
        %v813 = vsub.f32 %v797, %v807
        %v814 = vsub.f32 %v798, %v810
        %v815 = vmul.f32 %v811, 1.442695
        %v816 = vpow.pop %v815
        %v817 = vmul.f32 %v812, 1.442695
        %v818 = vpow.pop %v817
        %v819 = vmul.f32 %v813, 1.442695
        %v820 = vpow.pop %v819
        %v821 = vmul.f32 %v814, 1.442695
        %v822 = vpow.pop %v821
        %v823 = vsel %vm478, %v816, 0.0
        %824 = vadd.xlane.f32.xlu0 %v823
        %v825 = vpop.xlane.xlu0 %824
        %v826 = vsel %vm478, %v818, 0.0
        %827 = vadd.xlane.f32.xlu0 %v826
        %v828 = vpop.xlane.xlu0 %827
        %v829 = vsel %vm478, %v820, 0.0
        %830 = vadd.xlane.f32.xlu0 %v829
        %v831 = vpop.xlane.xlu0 %830
        %v832 = vsel %vm478, %v822, 0.0
        %833 = vadd.xlane.f32.xlu0 %v832
        %v834 = vpop.xlane.xlu0 %833
        %v835 = vrcp.pop %v825
        %v836 = vrcp.pop %v828
        %v837 = vrcp.pop %v831
        %v838 = vrcp.pop %v834
        %v839 = vmul.f32 %v816, %v835
        %v840 = vmul.f32 %v818, %v836
        %v841 = vmul.f32 %v820, %v837
        %v842 = vmul.f32 %v822, %v838
        %v844 = vsel %vm478, %v839, 0
        %846 = vmatpush.msra.mxu0 0.0
        %847 = vmatpush.msra.mxu0 0.0
        %848 = vmatpush.msra.mxu0 0.0
        %849 = vmatpush.msra.mxu0 0.0
        %850 = vmatpush.msra.mxu0 0.0
        %851 = vmatpush.msra.mxu0 0.0
        %852 = vmatpush.msra.mxu0 0.0
        %853 = vmatpush.msra.mxu0 0.0
        %854 = vmatpush.msra.mxu0 0.0
        %855 = vmatpush.msra.mxu0 0.0
        %856 = vmatpush.msra.mxu0 0.0
        %857 = vmatpush.msra.mxu0 0.0
        %858 = vmatpush.msra.mxu0 0.0
        %859 = vmatpush.msra.mxu0 0.0
        %860 = vmatpush.msra.mxu0 0.0
        %861 = vmatpush.msra.mxu0 %v676
        %862 = vmatmul.f32.gmra.mxu0 %v844
        %v863 = vpop.f32.mrf.mxu0
        %v864 = vadd.f32 0.0, %v863
        %865 = vdwg.mxu0
        %866 = vrot.lane.b32.xlu0 %v676, 126
        %v867 = vpop.permute.xlu0 %866
        %v870 = vsel %vm478, %v840, 0
        %872 = vmatpush.msra.mxu0 0.0
        %873 = vmatpush.msra.mxu0 0.0
        %874 = vmatpush.msra.mxu0 0.0
        %875 = vmatpush.msra.mxu0 0.0
        %876 = vmatpush.msra.mxu0 0.0
        %877 = vmatpush.msra.mxu0 0.0
        %878 = vmatpush.msra.mxu0 0.0
        %879 = vmatpush.msra.mxu0 0.0
        %880 = vmatpush.msra.mxu0 0.0
        %881 = vmatpush.msra.mxu0 0.0
        %882 = vmatpush.msra.mxu0 0.0
        %883 = vmatpush.msra.mxu0 0.0
        %884 = vmatpush.msra.mxu0 0.0
        %885 = vmatpush.msra.mxu0 0.0
        %886 = vmatpush.msra.mxu0 0.0
        %887 = vmatpush.msra.mxu0 %v867
        %888 = vmatmul.f32.gmra.mxu0 %v870
        %v889 = vpop.f32.mrf.mxu0
        %v890 = vadd.f32 0.0, %v889
        %891 = vdwg.mxu0
        %892 = vrot.lane.b32.xlu0 %v676, 124
        %v893 = vpop.permute.xlu0 %892
        %v896 = vsel %vm478, %v841, 0
        %898 = vmatpush.msra.mxu0 0.0
        %899 = vmatpush.msra.mxu0 0.0
        %900 = vmatpush.msra.mxu0 0.0
        %901 = vmatpush.msra.mxu0 0.0
        %902 = vmatpush.msra.mxu0 0.0
        %903 = vmatpush.msra.mxu0 0.0
        %904 = vmatpush.msra.mxu0 0.0
        %905 = vmatpush.msra.mxu0 0.0
        %906 = vmatpush.msra.mxu0 0.0
        %907 = vmatpush.msra.mxu0 0.0
        %908 = vmatpush.msra.mxu0 0.0
        %909 = vmatpush.msra.mxu0 0.0
        %910 = vmatpush.msra.mxu0 0.0
        %911 = vmatpush.msra.mxu0 0.0
        %912 = vmatpush.msra.mxu0 0.0
        %913 = vmatpush.msra.mxu0 %v893
        %914 = vmatmul.f32.gmra.mxu0 %v896
        %v915 = vpop.f32.mrf.mxu0
        %v916 = vadd.f32 0.0, %v915
        %917 = vdwg.mxu0
        %918 = vrot.lane.b32.xlu0 %v676, 122
        %v919 = vpop.permute.xlu0 %918
        %v922 = vsel %vm478, %v842, 0
        %924 = vmatpush.msra.mxu0 0.0
        %925 = vmatpush.msra.mxu0 0.0
        %926 = vmatpush.msra.mxu0 0.0
        %927 = vmatpush.msra.mxu0 0.0
        %928 = vmatpush.msra.mxu0 0.0
        %929 = vmatpush.msra.mxu0 0.0
        %930 = vmatpush.msra.mxu0 0.0
        %931 = vmatpush.msra.mxu0 0.0
        %932 = vmatpush.msra.mxu0 0.0
        %933 = vmatpush.msra.mxu0 0.0
        %934 = vmatpush.msra.mxu0 0.0
        %935 = vmatpush.msra.mxu0 0.0
        %936 = vmatpush.msra.mxu0 0.0
        %937 = vmatpush.msra.mxu0 0.0
        %938 = vmatpush.msra.mxu0 0.0
        %939 = vmatpush.msra.mxu0 %v919
        %940 = vmatmul.f32.gmra.mxu0 %v922
        %v941 = vpop.f32.mrf.mxu0
        %v942 = vadd.f32 0.0, %v941
        %943 = vdwg.mxu0
        %945 = vrot.lane.b32.xlu0 %v890, 2
        %v946 = vpop.permute.xlu0 %945
        %949 = vrot.lane.b32.xlu0 %v916, 4
        %v950 = vpop.permute.xlu0 %949
        %953 = vrot.lane.b32.xlu0 %v942, 6
        %v954 = vpop.permute.xlu0 %953
        %vm956 = vcmask 15360
        %v957 = vsel %vm956, %v864, %v946
        %vm958 = vcmask 31744
        %v959 = vsel %vm958, %v957, %v950
        %vm960 = vcmask 48128
        %v961 = vsel %vm960, %v959, %v954
        %v962 = vsel %vm478, %v961, -inf
        %963 = vmax.xlane.f32.xlu0 %v962
        %v964 = vpop.xlane.xlu0 %963
        %v965 = vsub.f32 %v961, %v964
        %v966 = vmul.f32 %v965, 1.442695
        %v967 = vpow.pop %v966
        %v968 = vsel %vm478, %v967, 0.0
        %969 = vadd.xlane.f32.xlu0 %v968
        %v970 = vpop.xlane.xlu0 %969
        %v971 = vrcp.pop %v970
        %v972 = vmul.f32 %v970, %v971
        %v973 = vsub.f32 1.0, %v972
        %v974 = vmul.f32 %v971, %v973
        %v975 = vadd.f32 %v971, %v974
        %vm976 = vweird.f32 %v970
        %vm977 = vweird.f32 %v971
        %vm978 = vmor %vm976, %vm977
        %v979 = vsel %vm978, %v971, %v975
        %v980 = vand.u32 2147483647, %v970
        %vm981 = vcmp.eq.f32.partialorder %v980, 8.507059e+37
        %v982 = vand.u32 %v970, 2147483648
        %v983 = vor.u32 1.1754944e-38, %v982
        %v984 = vsel %vm981, %v983, %v979
        %v985 = vmul.f32 %v967, %v984
        %986 = vst.msk [vmem:[%s309] sm:$0xff] %vm478, %v985
        %s987 = sand.u32 %s208, 1
        %s988 = scalar_lea.sflag [#allocation3], %s987
        %s989 = sand.u32 %s208, 1
        %s990 = smul.addr %s989, 8
        %s991 = scalar_lea.vmem [#allocation2], %s990
        // Predicated region
        $region53: #{tpu_custom_call.1} parent=51 // pred_check
          %p992 = pneg %p218
        $region54: #{tpu_custom_call.1} parent=51 // pred_check_branch
          %994 = sbr.rel (%p992) target = $region56
        $region55: #{tpu_custom_call.1} parent=51 // pred_region
          %996 = vsyncadd %s988, 0
          %s997 = smul.addr %s22, 8
          %s998 = scalar_lea.hbm %s8, %s997
          %s1000 = sshll.u32 %s991, 4
          %s1001 = int_to_ptr.vmem [resolvable:$true] %s1000
          %s1002 = sshll.u32 %s998, 4
          %s1003 = int_to_ptr.hbm [resolvable:$true] %s1002
          %1005 = dma.vmem_to_hbm [thread:$0]  %s1001, 128, %s1003, %s988
        $region56: #{tpu_custom_call.1} parent=51 // pred_fallthru
          _
      $region52: #{tpu_custom_call.1} parent=5 // pred_fallthru
        _
      %p1006 = scmp.le.s32.totalorder 2, %s17
      // Predicated region
      $region57: #{tpu_custom_call.1} parent=5 // pred_check
        %p1007 = pneg %p1006
      $region58: #{tpu_custom_call.1} parent=5 // pred_check_branch
        %1009 = sbr.rel (%p1007) target = $region60
      $region59: #{tpu_custom_call.1} parent=5 // pred_region
        %s1010 = ssub.s32 %s17, 2
        // Predicated region
        $region61: #{tpu_custom_call.1} parent=59 // pred_check
          %p1011 = pneg %p224
        $region62: #{tpu_custom_call.1} parent=59 // pred_check_branch
          %1013 = sbr.rel (%p1011) target = $region64
        $region63: #{tpu_custom_call.1} parent=59 // pred_region
          %s1014 = sand.u32 %s209, 1
          %s1015 = scalar_lea.sflag [#allocation3], %s1014
          %s1016 = sand.u32 %s209, 1
          %s1017 = smul.addr %s1016, 8
          %s1018 = scalar_lea.vmem [#allocation2], %s1017
          %1020 = dma.done %s1015, 128
        $region64: #{tpu_custom_call.1} parent=59 // pred_fallthru
          _
      $region60: #{tpu_custom_call.1} parent=5 // pred_fallthru
        _
    $region6: #{tpu_custom_call.1} parent=1 // loop_footer
      %s21 = sadd.s32 1, %s17
    $region7: #{tpu_custom_call.1} parent=1 // loop_footer_branch
      %16 = sbr.rel target = $region3
    $region8: #{tpu_custom_call.1} parent=1 // loop_exit
      _
    %1021 = vsyncpa [#allocation3], 1
    %s1022 = scalar_lea.sflag [#allocation3], 1
    %1023 = vsyncpa %s1022, 1

</llo_original>
